<compile_context>
chip_gen: v6e
topology: v6e:2x2x1
jax: 0.10.0
libtpu: 0.0.40
codegen_flags: <defaults>
</compile_context>

<pallas_src>
import jax
import jax.numpy as jnp
from jax.experimental import pallas as pl
from jax.experimental.pallas import tpu as pltpu


# ----------------------------- Pallas kernels ------------------------------ #

def _xmoment_kernel(x_ref, stats_ref):
    # x_ref: (B, C_in, T).  stats_ref: (1, 1, C_in, C_in + 1)
    #   stats[:, :C_in] = sum_b x_b @ x_b^T   (MXU, contraction over T)
    #   stats[:,  C_in] = sum_b sum_pix x_b
    nb = x_ref.shape[0]
    c_in = x_ref.shape[1]
    g_acc = jnp.zeros((c_in, c_in), jnp.float32)
    s_acc = jnp.zeros((c_in, 1), jnp.float32)
    for b in range(nb):                                # static unroll, B is small
        x = x_ref[b]
        g_acc = g_acc + jax.lax.dot_general(
            x, x, (((1,), (1,)), ((), ())), preferred_element_type=jnp.float32)
        s_acc = s_acc + jnp.sum(x, axis=1, keepdims=True)
    stats_ref[0, 0, :, 0:c_in] = g_acc
    stats_ref[0, 0, :, c_in:c_in + 1] = s_acc


def _deconv_bn_relu_kernel(x_ref, w_ref, scale_ref, shift_ref, o_ref):
    # x_ref: (B, C_in, T), w_ref: (KK, C_in), scale/shift: (KK, 1), o_ref: (B, KK, T)
    for b in range(x_ref.shape[0]):                    # static unroll, B is small
        p = jnp.dot(w_ref[...], x_ref[b], preferred_element_type=jnp.float32)
        y = p * scale_ref[...] + shift_ref[...]        # folded BN (lane broadcast)
        o_ref[b, :, :] = jnp.maximum(y, 0.0).astype(o_ref.dtype)


# ----------------------------- Tiling helpers ------------------------------ #

def _vmem_limit_bytes():
    """Generation-aware scoped-VMEM budget (<= 3/4 of physical, capped at 96 MiB)."""
    phys = 64 * 1024 * 1024                            # conservative default (v7x)
    try:
        info = pltpu.get_tpu_info()
        phys = int(getattr(info, "vmem_capacity_bytes", phys)) or phys
    except Exception:
        pass
    return min((phys * 3) // 4, 96 * 1024 * 1024)


def _pick_spatial_tile(hw, row_w, t_max):
    """Largest 128-multiple divisor of hw <= t_max, preferring multiples of row_w."""
    if hw <= t_max:
        return hw
    fallback = None
    t = (t_max // 128) * 128
    while t >= 128:
        if hw % t == 0:
            if t % row_w == 0:
                return t
            if fallback is None:
                fallback = t
        t -= 128
    if fallback is not None:
        return fallback
    # TODO(synk): pad HW or mask a ragged last tile instead of exceeding the budget.
    return hw


def _pick_batch_block(n, n_t, hw, t_max):
    """Block over batch when one spatial tile covers HW, keeping >= 2 grid steps."""
    if n_t > 1 or n <= 1:
        return 1
    cap = max(1, t_max // hw)
    if n >= 2:
        cap = min(cap, n // 2)                         # keep megacore fed on v7x
    cap = min(cap, 8)                                  # bound static kernel unroll
    best = 1
    for d in range(1, cap + 1):
        if n % d == 0:
            best = d
    return best


# ------------------------------ Host wrapper ------------------------------- #

def deconvblock_forward(x, params, output_size, *, stride, padding, eps=1e-5):
    """Forward of deconvblock.  x: (N, C_in, H, W) float32 (NCHW)."""
    w, b, gamma, beta = params                         # w: (C_in, C_out, kh, kw)
    del b  # ConvTranspose bias cancels exactly under training-mode BatchNorm.
    N, C_in, H, W = x.shape
    _, C_out, kh, kw = w.shape
    OH = (H - 1) * stride - 2 * padding + kh
    OW = (W - 1) * stride - 2 * padding + kw
    # TODO(synk): general overlapping-kernel / output_padding support; this kernel
    # covers the kernel==stride, padding==0 upsampling configuration.
    assert kh == stride and kw == stride and padding == 0
    assert tuple(output_size[-2:]) == (OH, OW), "output_size mismatch"

    HW = H * W
    KK = C_out * kh * kw

    # Byte-based, generation-aware tiling (double-buffered f32 in + out tiles).
    vmem_limit = _vmem_limit_bytes()
    t_budget = max(128, (vmem_limit // 2) // (2 * 4 * (C_in + KK)))
    T = _pick_spatial_tile(HW, W, t_budget)
    assert HW % T == 0, "spatial tile must divide H*W (stats correctness)"
    n_t = HW // T
    B = _pick_batch_block(N, n_t, HW, t_budget)
    assert N % B == 0
    n_b = N // B

    x3 = x.reshape(N, C_in, HW)                        # free (contiguous) reshape
    wmat = jnp.transpose(w.reshape(C_in, KK))          # (KK, C_in), row order (c,i,j)

    cparams = pltpu.CompilerParams(
        dimension_semantics=("parallel", "parallel"),
        vmem_limit_bytes=int(vmem_limit))

    # ---- pass 1: x-moment partials (pure streaming read of x, MXU contraction) ----
    stats = pl.pallas_call(
        _xmoment_kernel,
        out_shape=jax.ShapeDtypeStruct((n_b, n_t, C_in, C_in + 1), jnp.float32),
        grid=(n_b, n_t),
        in_specs=[pl.BlockSpec((B, C_in, T), lambda n, t: (n, 0, t))],
        out_specs=pl.BlockSpec((1, 1, C_in, C_in + 1), lambda n, t: (n, t, 0, 0)),
        compiler_params=cparams,
    )(x3)

    # ---- fold moments + affine into per-(c,i,j)-row scale/shift (tiny host math) ----
    cnt = jnp.float32(N * OH * OW)
    a = stats.sum(axis=(0, 1))                         # (C_in, C_in + 1)
    G = a[:, :C_in]                                    # sum_pix x x^T
    S = a[:, C_in]                                     # sum_pix x
    s_k = wmat @ S                                     # per-(c,i,j) deconv sum
    q_k = jnp.einsum("kc,cd,kd->k", wmat, G, wmat)     # per-(c,i,j) deconv sum-sq
    s_c = s_k.reshape(C_out, kh * kw).sum(axis=1)
    q_c = q_k.reshape(C_out, kh * kw).sum(axis=1)
    mean_c = s_c / cnt
    # TODO(synk): compensated accumulation for very large N*OH*OW (E[p^2]-E[p]^2
    # cancellation); clamp keeps rsqrt well-defined.
    var_c = jnp.maximum(q_c / cnt - mean_c * mean_c, 0.0)
    scale_c = gamma * jax.lax.rsqrt(var_c + eps)
    shift_c = beta - mean_c * scale_c
    scale_kk = jnp.repeat(scale_c, kh * kw).reshape(KK, 1)
    shift_kk = jnp.repeat(shift_c, kh * kw).reshape(KK, 1)

    # ---- pass 2: recompute cheap matmul, fused BN + ReLU, lane-dense store ----
    out_p = pl.pallas_call(
        _deconv_bn_relu_kernel,
        out_shape=jax.ShapeDtypeStruct((N, KK, HW), jnp.float32),
        grid=(n_b, n_t),
        in_specs=[
            pl.BlockSpec((B, C_in, T), lambda n, t: (n, 0, t)),
            pl.BlockSpec((KK, C_in), lambda n, t: (0, 0)),
            pl.BlockSpec((KK, 1), lambda n, t: (0, 0)),
            pl.BlockSpec((KK, 1), lambda n, t: (0, 0)),
        ],
        out_specs=pl.BlockSpec((B, KK, T), lambda n, t: (n, 0, t)),
        compiler_params=cparams,
    )(x3, wmat, scale_kk, shift_kk)

    # depth-to-space: (n, c, i, j, h, w) -> (n, c, h*kh+i, w*kw+j)  (NCHW).
    # TODO(synk): fold this interleave into the pass-2 kernel (in-VMEM shuffle +
    # flattened (N, C_out, OH*OW) store) when W is a multiple of 128; for small W
    # the lane-granularity shuffle does not lower cleanly in Mosaic today.
    out = out_p.reshape(N, C_out, kh, kw, H, W)
    out = jnp.transpose(out, (0, 1, 4, 2, 5, 3)).reshape(N, C_out, OH, OW)
    return out


# --------------------------- Pure-JAX reference ---------------------------- #

def _reference(x, params, *, stride, padding, eps=1e-5):
    w, b, gamma, beta = params
    # ConvTranspose2d == dilated conv with spatially flipped, IO-swapped kernel.
    rhs = jnp.transpose(w, (1, 0, 2, 3))[:, :, ::-1, ::-1]      # (C_out, C_in, kh, kw)
    kh = w.shape[2]
    pad = kh - 1 - padding
    y = jax.lax.conv_general_dilated(
        x, rhs, window_strides=(1, 1),
        padding=[(pad, pad), (pad, pad)],
        lhs_dilation=(stride, stride),
        dimension_numbers=("NCHW", "OIHW", "NCHW"))
    y = y + b.reshape(1, -1, 1, 1)
    mean = jnp.mean(y, axis=(0, 2, 3), keepdims=True)
    var = jnp.mean((y - mean) ** 2, axis=(0, 2, 3), keepdims=True)
    y = (y - mean) * jax.lax.rsqrt(var + eps) * gamma.reshape(1, -1, 1, 1) \
        + beta.reshape(1, -1, 1, 1)
    return jnp.maximum(y, 0.0)


# ----------------------------------- Main ----------------------------------- #

if __name__ == "__main__":
    # deconvblock(input_channel=4, output_channel=8, kernel=2, padding=0,
    #             stride=2, bias=True)
    N, C_in, H, W = 2, 4, 16, 16
    C_out, kernel, padding, stride = 8, 2, 0, 2

    key = jax.random.PRNGKey(0)
    k_x, k_w, k_b, k_g, k_be = jax.random.split(key, 5)

    x = jax.random.normal(k_x, (N, C_in, H, W), dtype=jnp.float32)
    # ConvTranspose2d weight: (in_channels, out_channels, kH, kW)
    w = jax.random.normal(k_w, (C_in, C_out, kernel, kernel), dtype=jnp.float32) * 0.1
    b = jax.random.normal(k_b, (C_out,), dtype=jnp.float32) * 0.1
    gamma = 1.0 + 0.1 * jax.random.normal(k_g, (C_out,), dtype=jnp.float32)
    beta = 0.1 * jax.random.normal(k_be, (C_out,), dtype=jnp.float32)
    params = (w, b, gamma, beta)

    output_size = (N, C_out, (H - 1) * stride - 2 * padding + kernel,
                   (W - 1) * stride - 2 * padding + kernel)   # (2, 8, 32, 32)

    fwd = jax.jit(deconvblock_forward, static_argnums=(2,),
                  static_argnames=("stride", "padding"))
    out = fwd(x, params, output_size, stride=stride, padding=padding)
    out = jax.block_until_ready(out)

    ref = _reference(x, params, stride=stride, padding=padding)
    assert out.shape == tuple(output_size), out.shape
    assert jnp.allclose(out, ref, atol=1e-4, rtol=1e-4), "mismatch vs reference"

    print("KERNEL_OK")
</pallas_src>

<mosaic_0001>
module attributes {stable_mosaic.version = 11 : i64} {
  func.func @_xmoment_kernel(%arg0: i32, %arg1: i32, %arg2: memref<1x4x256xf32, #tpu.memory_space<vmem>>, %arg3: memref<1x1x4x5xf32, #tpu.memory_space<vmem>>) attributes {dimension_semantics = [#tpu.dimension_semantics<parallel>, #tpu.dimension_semantics<parallel>], iteration_bounds = array<i64: 2, 1>, scalar_prefetch = 0 : i64, scratch_operands = 0 : i64, tpu.core_type = #tpu.core_type<tc>, window_params = [{transform_indices = @transform_0, window_bounds = array<i64: 1, 4, 256>}, {transform_indices = @transform_1, window_bounds = array<i64: 1, 1, 4, 5>}]} {
    %cst = arith.constant 0.000000e+00 : f32
    %0 = vector.broadcast %cst : f32 to vector<4x4xf32>
    %cst_0 = arith.constant 0.000000e+00 : f32
    %1 = vector.broadcast %cst_0 : f32 to vector<4x1xf32>
    %c0 = arith.constant 0 : index
    %c0_1 = arith.constant 0 : index
    %c0_2 = arith.constant 0 : index
    %2 = vector.load %arg2[%c0, %c0_1, %c0_2] : memref<1x4x256xf32, #tpu.memory_space<vmem>>, vector<1x4x256xf32>
    %3 = vector.shape_cast %2 : vector<1x4x256xf32> to vector<4x256xf32>
    %cst_3 = arith.constant dense<0.000000e+00> : vector<4x4xf32>
    %4 = tpu.matmul %3, %3, %cst_3 {dimension_numbers = #tpu.dot_dimension_numbers<[1], [1], [0], [0], [0, 0, 1, 0], [], []>} : vector<4x256xf32>, vector<4x256xf32>, vector<4x4xf32> -> vector<4x4xf32>
    %5 = arith.addf %0, %4 : vector<4x4xf32>
    %cst_4 = arith.constant dense<0.000000e+00> : vector<4xf32>
    %6 = vector.multi_reduction <add>, %3, %cst_4 [1] : vector<4x256xf32> to vector<4xf32>
    %7 = vector.shape_cast %6 : vector<4xf32> to vector<4x1xf32>
    %8 = arith.addf %1, %7 : vector<4x1xf32>
    %c0_5 = arith.constant 0 : index
    %c0_6 = arith.constant 0 : index
    %c0_7 = arith.constant 0 : index
    %c0_8 = arith.constant 0 : index
    %9 = vector.load %arg3[%c0_5, %c0_6, %c0_7, %c0_8] : memref<1x1x4x5xf32, #tpu.memory_space<vmem>>, vector<1x1x4x4xf32>
    %10 = vector.shape_cast %9 : vector<1x1x4x4xf32> to vector<4x4xf32>
    %11 = vector.shape_cast %5 : vector<4x4xf32> to vector<1x1x4x4xf32>
    tpu.vector_store %arg3[%c0_5, %c0_6, %c0_7, %c0_8], %11 {strides = array<i32>} : memref<1x1x4x5xf32, #tpu.memory_space<vmem>>, vector<1x1x4x4xf32>,
    %c0_9 = arith.constant 0 : index
    %c0_10 = arith.constant 0 : index
    %c0_11 = arith.constant 0 : index
    %c4 = arith.constant 4 : index
    %12 = vector.load %arg3[%c0_9, %c0_10, %c0_11, %c4] : memref<1x1x4x5xf32, #tpu.memory_space<vmem>>, vector<1x1x4x1xf32>
    %13 = vector.shape_cast %12 : vector<1x1x4x1xf32> to vector<4x1xf32>
    %14 = vector.shape_cast %8 : vector<4x1xf32> to vector<1x1x4x1xf32>
    tpu.vector_store %arg3[%c0_9, %c0_10, %c0_11, %c4], %14 {strides = array<i32>} : memref<1x1x4x5xf32, #tpu.memory_space<vmem>>, vector<1x1x4x1xf32>,
    return
  }
  func.func @transform_0(%arg0: i32, %arg1: i32) -> (i32, i32, i32) {
    %c0_i32 = arith.constant 0 : i32
    %c0_i32_0 = arith.constant 0 : i32
    return %arg0, %c0_i32, %arg1 : i32, i32, i32
  }
  func.func @transform_1(%arg0: i32, %arg1: i32) -> (i32, i32, i32, i32) {
    %c0_i32 = arith.constant 0 : i32
    %c0_i32_0 = arith.constant 0 : i32
    %c0_i32_1 = arith.constant 0 : i32
    return %arg0, %arg1, %c0_i32, %c0_i32_0 : i32, i32, i32, i32
  }
}

module attributes {stable_mosaic.version = 11 : i64} {
  func.func @_deconv_bn_relu_kernel(%arg0: i32, %arg1: i32, %arg2: memref<1x4x256xf32, #tpu.memory_space<vmem>>, %arg3: memref<32x4xf32, #tpu.memory_space<vmem>>, %arg4: memref<32x1xf32, #tpu.memory_space<vmem>>, %arg5: memref<32x1xf32, #tpu.memory_space<vmem>>, %arg6: memref<1x32x256xf32, #tpu.memory_space<vmem>>) attributes {dimension_semantics = [#tpu.dimension_semantics<parallel>, #tpu.dimension_semantics<parallel>], iteration_bounds = array<i64: 2, 1>, scalar_prefetch = 0 : i64, scratch_operands = 0 : i64, tpu.core_type = #tpu.core_type<tc>, window_params = [{transform_indices = @transform_0, window_bounds = array<i64: 1, 4, 256>}, {pipeline_mode = #tpu.pipeline_mode<synchronous>, transform_indices = @transform_1, window_bounds = array<i64: 32, 4>}, {pipeline_mode = #tpu.pipeline_mode<synchronous>, transform_indices = @transform_2, window_bounds = array<i64: 32, 1>}, {pipeline_mode = #tpu.pipeline_mode<synchronous>, transform_indices = @transform_3, window_bounds = array<i64: 32, 1>}, {transform_indices = @transform_4, window_bounds = array<i64: 1, 32, 256>}]} {
    %c0 = arith.constant 0 : index
    %c0_0 = arith.constant 0 : index
    %0 = vector.load %arg3[%c0, %c0_0] : memref<32x4xf32, #tpu.memory_space<vmem>>, vector<32x4xf32>
    %c0_1 = arith.constant 0 : index
    %c0_2 = arith.constant 0 : index
    %c0_3 = arith.constant 0 : index
    %1 = vector.load %arg2[%c0_1, %c0_2, %c0_3] : memref<1x4x256xf32, #tpu.memory_space<vmem>>, vector<1x4x256xf32>
    %2 = vector.shape_cast %1 : vector<1x4x256xf32> to vector<4x256xf32>
    %cst = arith.constant dense<0.000000e+00> : vector<32x256xf32>
    %3 = tpu.matmul %0, %2, %cst {dimension_numbers = #tpu.dot_dimension_numbers<[1], [0], [0], [1], [0, 0, 1, 1], [], []>} : vector<32x4xf32>, vector<4x256xf32>, vector<32x256xf32> -> vector<32x256xf32>
    %c0_4 = arith.constant 0 : index
    %c0_5 = arith.constant 0 : index
    %4 = vector.load %arg4[%c0_4, %c0_5] : memref<32x1xf32, #tpu.memory_space<vmem>>, vector<32x1xf32>
    %5 = vector.broadcast %4 : vector<32x1xf32> to vector<32x256xf32>
    %6 = arith.mulf %3, %5 : vector<32x256xf32>
    %c0_6 = arith.constant 0 : index
    %c0_7 = arith.constant 0 : index
    %7 = vector.load %arg5[%c0_6, %c0_7] : memref<32x1xf32, #tpu.memory_space<vmem>>, vector<32x1xf32>
    %8 = vector.broadcast %7 : vector<32x1xf32> to vector<32x256xf32>
    %9 = arith.addf %6, %8 : vector<32x256xf32>
    %cst_8 = arith.constant 0.000000e+00 : f32
    %10 = vector.broadcast %cst_8 : f32 to vector<32x256xf32>
    %11 = arith.maximumf %9, %10 : vector<32x256xf32>
    %c0_9 = arith.constant 0 : index
    %c0_10 = arith.constant 0 : index
    %c0_11 = arith.constant 0 : index
    %12 = vector.load %arg6[%c0_9, %c0_10, %c0_11] : memref<1x32x256xf32, #tpu.memory_space<vmem>>, vector<1x32x256xf32>
    %13 = vector.shape_cast %12 : vector<1x32x256xf32> to vector<32x256xf32>
    %14 = vector.shape_cast %11 : vector<32x256xf32> to vector<1x32x256xf32>
    tpu.vector_store %arg6[%c0_9, %c0_10, %c0_11], %14 {strides = array<i32>} : memref<1x32x256xf32, #tpu.memory_space<vmem>>, vector<1x32x256xf32>,
    return
  }
  func.func @transform_0(%arg0: i32, %arg1: i32) -> (i32, i32, i32) {
    %c0_i32 = arith.constant 0 : i32
    %c0_i32_0 = arith.constant 0 : i32
    return %arg0, %c0_i32, %arg1 : i32, i32, i32
  }
  func.func @transform_1(%arg0: i32, %arg1: i32) -> (i32, i32) {
    %c0_i32 = arith.constant 0 : i32
    %c0_i32_0 = arith.constant 0 : i32
    %c0_i32_1 = arith.constant 0 : i32
    return %c0_i32, %c0_i32_0 : i32, i32
  }
  func.func @transform_2(%arg0: i32, %arg1: i32) -> (i32, i32) {
    %c0_i32 = arith.constant 0 : i32
    %c0_i32_0 = arith.constant 0 : i32
    %c0_i32_1 = arith.constant 0 : i32
    return %c0_i32, %c0_i32_0 : i32, i32
  }
  func.func @transform_3(%arg0: i32, %arg1: i32) -> (i32, i32) {
    %c0_i32 = arith.constant 0 : i32
    %c0_i32_0 = arith.constant 0 : i32
    %c0_i32_1 = arith.constant 0 : i32
    return %c0_i32, %c0_i32_0 : i32, i32
  }
  func.func @transform_4(%arg0: i32, %arg1: i32) -> (i32, i32, i32) {
    %c0_i32 = arith.constant 0 : i32
    %c0_i32_0 = arith.constant 0 : i32
    return %arg0, %c0_i32, %arg1 : i32, i32, i32
  }
}

</mosaic_0001>

<llo_original>
// kernel: deconvblock_forward.2
$region0: #{deconvblock_forward.2}
  #allocation0 [shape = 'u32[]', space=smem, size = 0x4, offset = 0x4, fixed_abs, tag = 'smem constant byte address 0x4 - core index']
  #allocation1 [shape = 'u32[144,128]{1,0:T(1,128)}', space=vmem, size = 0x12000, scoped, tag = 'internal scratch']
  %s0 = inlined_call_operand.vmem [shape: f32[2,4,256], index: 0, kind: input, shape index: {}]
  %s1 = inlined_call_operand.vmem [shape: f32[2,1,4,5], index: 1, kind: output, shape index: {}]
  %s2 = sld [smem:[#allocation0]]
  $region37: #{deconvblock_forward.2} parent=0
    _
  %s4 = ssub.s32 1, %s2
  %s5 = scalar_select 0, %s4, %s2
  loop: start=0, step=1, limit=4
  $region2: #{deconvblock_forward.2} parent=0 // loop_pre_header
    _
  $region3: #{deconvblock_forward.2} parent=0 // loop_header
    %s7 = sphi 0, %s11
    %p8 = scmp.ge.s32.totalorder %s7, 4
    %s14 = sphi 0, %s26
    %s15 = sphi 0, %s22
    %s16 = sphi 0, %s14
    %s17 = sphi 0, %s15
    %s18 = sphi 0, %s16
    %s19 = sphi 0, %s17
    %s31 = sphi 0, %s33
    %s34 = sphi 0, %s31
    %s35 = sphi 0, %s34
    %s51 = sphi 0, %s35
    %s59 = sphi 0, %s61
    %s62 = sphi 0, %s59
    %s63 = sphi 0, %s62
    %s79 = sphi 0, %s63
  $region4: #{deconvblock_forward.2} parent=0 // loop_header_branch
    %10 = sbr.rel (%p8) target = $region8
  $region5: #{deconvblock_forward.2} parent=0 // loop_body
    %s12 = ssub.s32 %s7, 1
    %s13 = ssub.s32 %s7, 2
    %s20 = sadd.s32 1, %s15
    %p21 = scmp.ge.s32.totalorder %s20, 1
    %s22 = scalar_select %p21, 0, %s20
    %s23 = sadd.s32 1, %s14
    %s24 = scalar_select %p21, %s23, %s14
    %p25 = scmp.ge.s32.totalorder %s24, 2
    %s26 = scalar_select %p25, 0, %s24
    %s27 = ssub.s32 %s14, %s26
    %s28 = ssub.s32 %s15, %s22
    %s29 = sor.u32 %s27, %s28
    %p30 = scmp.eq.s32.totalorder %s29, 0
    %s32 = sadd.s32 %s31, 1
    %s33 = scalar_select %p30, %s31, %s32
    %p36 = pneg %p30
    %p37 = scmp.eq.s32.totalorder %s7, 1
    %p38 = por %p36, %p37
    %p39 = scmp.ne.s32.totalorder %s31, %s34
    %p40 = scmp.eq.s32.totalorder %s7, 0
    %p41 = por %p39, %p40
    %p42 = scmp.ne.s32.totalorder %s31, %s34
    %p43 = scmp.eq.s32.totalorder %s12, 1
    %p44 = por %p42, %p43
    %p45 = scmp.ne.s32.totalorder %s34, %s35
    %p46 = scmp.eq.s32.totalorder %s12, 0
    %p47 = por %p45, %p46
    %p48 = scmp.ne.s32.totalorder %s34, %s35
    %p49 = scmp.eq.s32.totalorder %s13, 1
    %p50 = por %p48, %p49
    %p52 = scmp.ne.s32.totalorder %s35, %s51
    %p53 = scmp.eq.s32.totalorder %s13, 0
    %p54 = por %p52, %p53
    %s55 = ssub.s32 %s14, %s26
    %s56 = ssub.s32 %s15, %s22
    %s57 = sor.u32 %s55, %s56
    %p58 = scmp.eq.s32.totalorder %s57, 0
    %s60 = sadd.s32 %s59, 1
    %s61 = scalar_select %p58, %s59, %s60
    %p64 = pneg %p58
    %p65 = scmp.eq.s32.totalorder %s7, 1
    %p66 = por %p64, %p65
    %p67 = scmp.ne.s32.totalorder %s59, %s62
    %p68 = scmp.eq.s32.totalorder %s7, 0
    %p69 = por %p67, %p68
    %p70 = scmp.ne.s32.totalorder %s59, %s62
    %p71 = scmp.eq.s32.totalorder %s12, 1
    %p72 = por %p70, %p71
    %p73 = scmp.ne.s32.totalorder %s62, %s63
    %p74 = scmp.eq.s32.totalorder %s12, 0
    %p75 = por %p73, %p74
    %p76 = scmp.ne.s32.totalorder %s62, %s63
    %p77 = scmp.eq.s32.totalorder %s13, 1
    %p78 = por %p76, %p77
    %p80 = scmp.ne.s32.totalorder %s63, %s79
    %p81 = scmp.eq.s32.totalorder %s13, 0
    %p82 = por %p80, %p81
    %p83 = scmp.le.s32.totalorder 1, %s7
    %p84 = scmp.lt.s32.totalorder %s7, 3
    %p85 = pnand %p83, %p84
    %p86 = pneg %p85
    // Predicated region
    $region9: #{deconvblock_forward.2} parent=5 // pred_check
      _
    $region10: #{deconvblock_forward.2} parent=5 // pred_check_branch
      %88 = sbr.rel (%p85) target = $region12
    $region11: #{deconvblock_forward.2} parent=5 // pred_region
      %s89 = ssub.s32 %s7, 1
    $region12: #{deconvblock_forward.2} parent=5 // pred_fallthru
      _
    %p90 = scmp.lt.s32.totalorder %s7, 2
    // Predicated region
    $region13: #{deconvblock_forward.2} parent=5 // pred_check
      %p91 = pneg %p90
    $region14: #{deconvblock_forward.2} parent=5 // pred_check_branch
      %93 = sbr.rel (%p91) target = $region16
    $region15: #{deconvblock_forward.2} parent=5 // pred_region
      // Predicated region
      $region17: #{deconvblock_forward.2} parent=15 // pred_check
        %p94 = pneg %p41
      $region18: #{deconvblock_forward.2} parent=15 // pred_check_branch
        %96 = sbr.rel (%p94) target = $region20
      $region19: #{deconvblock_forward.2} parent=15 // pred_region
        %s97 = smul.u32 2, %s15
        %p98 = scmp.lt.s32.totalorder %s14, 1
        %s99 = scalar_select %p98, %s14, 1
        %p100 = scmp.lt.s32.totalorder %s97, 1
        %s101 = scalar_select %p100, %s97, 1
        %s102 = smul.addr %s99, 2
        %s103 = sadd.s32 %s101, %s102
        %s104 = smul.addr %s103, 4
        %s105 = scalar_lea.vmem %s0, %s104
        %s106 = smul.u32 2, %s15
      $region20: #{deconvblock_forward.2} parent=15 // pred_fallthru
        _
    $region16: #{deconvblock_forward.2} parent=5 // pred_fallthru
      _
    %p107 = scmp.le.s32.totalorder 1, %s7
    %p108 = scmp.lt.s32.totalorder %s7, 3
    %p109 = pnand %p107, %p108
    %p110 = pneg %p109
    // Predicated region
    $region21: #{deconvblock_forward.2} parent=5 // pred_check
      _
    $region22: #{deconvblock_forward.2} parent=5 // pred_check_branch
      %112 = sbr.rel (%p109) target = $region24
    $region23: #{deconvblock_forward.2} parent=5 // pred_region
      %s113 = ssub.s32 %s7, 1
      %s114 = smul.u32 2, %s17
      %p115 = scmp.lt.s32.totalorder %s16, 1
      %s116 = scalar_select %p115, %s16, 1
      %p117 = scmp.lt.s32.totalorder %s114, 1
      %s118 = scalar_select %p117, %s114, 1
      %s119 = smul.addr %s116, 2
      %s120 = sadd.s32 %s118, %s119
      %s121 = smul.addr %s120, 4
      %s122 = scalar_lea.vmem %s0, %s121
      %p123 = pneg %p47
      %p124 = pneg %p44
      %p125 = pneg %p75
      %p126 = pneg %p72
      %p127 = scmp.lt.s32.totalorder %s16, 1
      %s128 = scalar_select %p127, %s16, 1
      %p129 = scmp.lt.s32.totalorder %s17, 0
      %s130 = scalar_select %p129, %s17, 0
      %s131 = sadd.s32 %s130, %s128
      %s132 = smul.addr %s131, 4
      %s133 = scalar_lea.vmem %s1, %s132
      %s134 = smul.u32 2, %s17
      %p135 = scmp.lt.s32.totalorder %s16, 1
      %s136 = scalar_select %p135, %s16, 1
      %p137 = scmp.lt.s32.totalorder %s134, 1
      %s138 = scalar_select %p137, %s134, 1
      %s139 = smul.addr %s136, 2
      %s140 = sadd.s32 %s138, %s139
      %s141 = smul.addr %s140, 4
      %s142 = scalar_lea.vmem %s0, %s141
      %s143 = smul.u32 2, %s17
      %p144 = scmp.lt.s32.totalorder %s16, 1
      %s145 = scalar_select %p144, %s16, 1
      %p146 = scmp.lt.s32.totalorder %s17, 0
      %s147 = scalar_select %p146, %s17, 0
      %s148 = sadd.s32 %s147, %s145
      %s149 = smul.addr %s148, 4
      %s150 = scalar_lea.vmem %s1, %s149
      %v151 = vld [vmem:[%s142] sm:$0xff]
      %v153 = vcombine.high %v151, %v151
      %155 = vmatprep.subr.mxu0 0.0
      %156 = vmatpush1.xpose.msra.mxu0 0.0
      %157 = vmatprep.subr.mxu0 0.0
      %158 = vmatpush1.xpose.msra.mxu0 0.0
      %159 = vmatprep.subr.mxu0 0.0
      %160 = vmatpush1.xpose.msra.mxu0 0.0
      %161 = vmatprep.subr.mxu0 0.0
      %162 = vmatpush1.xpose.msra.mxu0 0.0
      %163 = vmatprep.subr.mxu0 0.0
      %164 = vmatpush1.xpose.msra.mxu0 0.0
      %165 = vmatprep.subr.mxu0 0.0
      %166 = vmatpush1.xpose.msra.mxu0 0.0
      %167 = vmatprep.subr.mxu0 0.0
      %168 = vmatpush1.xpose.msra.mxu0 0.0
      %169 = vmatprep.subr.mxu0 0.0
      %170 = vmatpush1.xpose.msra.mxu0 0.0
      %171 = vmatprep.subr.mxu0 0.0
      %172 = vmatpush1.xpose.msra.mxu0 0.0
      %173 = vmatprep.subr.mxu0 0.0
      %174 = vmatpush1.xpose.msra.mxu0 0.0
      %175 = vmatprep.subr.mxu0 0.0
      %176 = vmatpush1.xpose.msra.mxu0 0.0
      %177 = vmatprep.subr.mxu0 0.0
      %178 = vmatpush1.xpose.msra.mxu0 0.0
      %179 = vmatprep.subr.mxu0 0.0
      %180 = vmatpush1.xpose.msra.mxu0 0.0
      %181 = vmatprep.subr.mxu0 0.0
      %182 = vmatpush1.xpose.msra.mxu0 0.0
      %183 = vmatprep.subr.mxu0 0.0
      %184 = vmatpush1.xpose.msra.mxu0 0.0
      %185 = vmatprep.subr.mxu0 %v153
      %186 = vmatpush1.xpose.msra.mxu0 %v151
      %187 = vmatprep.subr.mxu0 0.0
      %188 = vmatpush2.xpose.msra.mxu0 0.0
      %189 = vmatprep.subr.mxu0 0.0
      %190 = vmatpush2.xpose.msra.mxu0 0.0
      %191 = vmatprep.subr.mxu0 0.0
      %192 = vmatpush2.xpose.msra.mxu0 0.0
      %193 = vmatprep.subr.mxu0 0.0
      %194 = vmatpush2.xpose.msra.mxu0 0.0
      %195 = vmatprep.subr.mxu0 0.0
      %196 = vmatpush2.xpose.msra.mxu0 0.0
      %197 = vmatprep.subr.mxu0 0.0
      %198 = vmatpush2.xpose.msra.mxu0 0.0
      %199 = vmatprep.subr.mxu0 0.0
      %200 = vmatpush2.xpose.msra.mxu0 0.0
      %201 = vmatprep.subr.mxu0 0.0
      %202 = vmatpush2.xpose.msra.mxu0 0.0
      %203 = vmatprep.subr.mxu0 0.0
      %204 = vmatpush2.xpose.msra.mxu0 0.0
      %205 = vmatprep.subr.mxu0 0.0
      %206 = vmatpush2.xpose.msra.mxu0 0.0
      %207 = vmatprep.subr.mxu0 0.0
      %208 = vmatpush2.xpose.msra.mxu0 0.0
      %209 = vmatprep.subr.mxu0 0.0
      %210 = vmatpush2.xpose.msra.mxu0 0.0
      %211 = vmatprep.subr.mxu0 0.0
      %212 = vmatpush2.xpose.msra.mxu0 0.0
      %213 = vmatprep.subr.mxu0 0.0
      %214 = vmatpush2.xpose.msra.mxu0 0.0
      %215 = vmatprep.subr.mxu0 0.0
      %216 = vmatpush2.xpose.msra.mxu0 0.0
      %217 = vmatprep.subr.mxu0 0.0
      %218 = vmatpush2.xpose.msra.mxu0 0.0
      %219 = vmatprep.mubr.f32.mxu0 %v153
      %220 = vmatmul.mubr.f32.gmra.mxu0 %v151
      %v221 = vpop.f32.mrf.mxu0
      %v222 = vadd.f32 0.0, %v221
      %v223 = vpop.f32.mrf.mxu0
      %224 = vdwg.mxu0
      %vm225 = vcmask 1043456
      %v226 = vsel %vm225, %v151, 0.0
      %v227 = vsel %vm225, %v153, 0.0
      %v228 = vadd.f32 %v226, %v227
      %229 = vadd.xlane.f32.xlu0 %v228
      %v230 = vpop.xlane.xlu0 %229
      %v231 = vadd.f32 %v230, 0.0
      %vm232 = vcmask 27648
      %233 = vst.msk [vmem:[%s150] sm:$0xf] %vm232, %v222
      %vm234 = vcmask 35872
      %235 = vst.msk [vmem:[%s150] sm:$0xf] %vm234, %v231
      %p236 = scmp.lt.s32.totalorder %s16, 1
      %s237 = scalar_select %p236, %s16, 1
      %p238 = scmp.lt.s32.totalorder %s17, 0
      %s239 = scalar_select %p238, %s17, 0
      %s240 = sadd.s32 %s239, %s237
      %s241 = smul.addr %s240, 4
      %s242 = scalar_lea.vmem %s1, %s241
      // Predicated region
      $region25: #{deconvblock_forward.2} parent=23 // pred_check
        %p243 = pneg %p72
      $region26: #{deconvblock_forward.2} parent=23 // pred_check_branch
        %245 = sbr.rel (%p243) target = $region28
      $region27: #{deconvblock_forward.2} parent=23 // pred_region
        _
      $region28: #{deconvblock_forward.2} parent=23 // pred_fallthru
        _
    $region24: #{deconvblock_forward.2} parent=5 // pred_fallthru
      _
    %p246 = scmp.le.s32.totalorder 2, %s7
    // Predicated region
    $region29: #{deconvblock_forward.2} parent=5 // pred_check
      %p247 = pneg %p246
    $region30: #{deconvblock_forward.2} parent=5 // pred_check_branch
      %249 = sbr.rel (%p247) target = $region32
    $region31: #{deconvblock_forward.2} parent=5 // pred_region
      %s250 = ssub.s32 %s7, 2
      // Predicated region
      $region33: #{deconvblock_forward.2} parent=31 // pred_check
        %p251 = pneg %p78
      $region34: #{deconvblock_forward.2} parent=31 // pred_check_branch
        %253 = sbr.rel (%p251) target = $region36
      $region35: #{deconvblock_forward.2} parent=31 // pred_region
        %p254 = scmp.lt.s32.totalorder %s18, 1
        %s255 = scalar_select %p254, %s18, 1
        %p256 = scmp.lt.s32.totalorder %s19, 0
        %s257 = scalar_select %p256, %s19, 0
        %s258 = sadd.s32 %s257, %s255
        %s259 = smul.addr %s258, 4
        %s260 = scalar_lea.vmem %s1, %s259
      $region36: #{deconvblock_forward.2} parent=31 // pred_fallthru
        _
    $region32: #{deconvblock_forward.2} parent=5 // pred_fallthru
      _
  $region6: #{deconvblock_forward.2} parent=0 // loop_footer
    %s11 = sadd.s32 1, %s7
  $region7: #{deconvblock_forward.2} parent=0 // loop_footer_branch
    %6 = sbr.rel target = $region3
  $region8: #{deconvblock_forward.2} parent=0 // loop_exit
    _

// kernel: deconvblock_forward.3
$region0: #{deconvblock_forward.3}
  #allocation0 [shape = 'u32[]', space=smem, size = 0x4, offset = 0x4, fixed_abs, tag = 'smem constant byte address 0x4 - core index']
  #allocation1 [shape = 'u32[144,128]{1,0:T(1,128)}', space=vmem, size = 0x12000, scoped, tag = 'internal scratch']
  %s0 = inlined_call_operand.vmem [shape: f32[2,4,256], index: 0, kind: input, shape index: {}]
  %s1 = inlined_call_operand.vmem [shape: f32[32,4], index: 1, kind: input, shape index: {}]
  %s2 = inlined_call_operand.vmem [shape: f32[32,1], index: 2, kind: input, shape index: {}]
  %s3 = inlined_call_operand.vmem [shape: f32[32,1], index: 3, kind: input, shape index: {}]
  %s4 = inlined_call_operand.vmem [shape: f32[2,32,256], index: 4, kind: output, shape index: {}]
  %s5 = sld [smem:[#allocation0]]
  $region49: #{deconvblock_forward.3} parent=0
    _
  %s7 = ssub.s32 1, %s5
  %s8 = scalar_select 0, %s7, %s5
  loop: start=0, step=1, limit=4
  $region2: #{deconvblock_forward.3} parent=0 // loop_pre_header
    _
  $region3: #{deconvblock_forward.3} parent=0 // loop_header
    %s10 = sphi 0, %s14
    %p11 = scmp.ge.s32.totalorder %s10, 4
    %s17 = sphi 0, %s29
    %s18 = sphi 0, %s25
    %s19 = sphi 0, %s17
    %s20 = sphi 0, %s18
    %s21 = sphi 0, %s19
    %s22 = sphi 0, %s20
    %s34 = sphi 0, %s36
    %s37 = sphi 0, %s34
    %s38 = sphi 0, %s37
    %s54 = sphi 0, %s38
    %s58 = sphi 0, %s58
    %s60 = sphi 0, %s58
    %s61 = sphi 0, %s60
    %s75 = sphi 0, %s61
    %s79 = sphi 0, %s79
    %s81 = sphi 0, %s79
    %s82 = sphi 0, %s81
    %s96 = sphi 0, %s82
    %s100 = sphi 0, %s100
    %s102 = sphi 0, %s100
    %s103 = sphi 0, %s102
    %s117 = sphi 0, %s103
    %s125 = sphi 0, %s127
    %s128 = sphi 0, %s125
    %s129 = sphi 0, %s128
    %s145 = sphi 0, %s129
  $region4: #{deconvblock_forward.3} parent=0 // loop_header_branch
    %13 = sbr.rel (%p11) target = $region8
  $region5: #{deconvblock_forward.3} parent=0 // loop_body
    %s15 = ssub.s32 %s10, 1
    %s16 = ssub.s32 %s10, 2
    %s23 = sadd.s32 1, %s18
    %p24 = scmp.ge.s32.totalorder %s23, 1
    %s25 = scalar_select %p24, 0, %s23
    %s26 = sadd.s32 1, %s17
    %s27 = scalar_select %p24, %s26, %s17
    %p28 = scmp.ge.s32.totalorder %s27, 2
    %s29 = scalar_select %p28, 0, %s27
    %s30 = ssub.s32 %s17, %s29
    %s31 = ssub.s32 %s18, %s25
    %s32 = sor.u32 %s30, %s31
    %p33 = scmp.eq.s32.totalorder %s32, 0
    %s35 = sadd.s32 %s34, 1
    %s36 = scalar_select %p33, %s34, %s35
    %p39 = pneg %p33
    %p40 = scmp.eq.s32.totalorder %s10, 1
    %p41 = por %p39, %p40
    %p42 = scmp.ne.s32.totalorder %s34, %s37
    %p43 = scmp.eq.s32.totalorder %s10, 0
    %p44 = por %p42, %p43
    %p45 = scmp.ne.s32.totalorder %s34, %s37
    %p46 = scmp.eq.s32.totalorder %s15, 1
    %p47 = por %p45, %p46
    %p48 = scmp.ne.s32.totalorder %s37, %s38
    %p49 = scmp.eq.s32.totalorder %s15, 0
    %p50 = por %p48, %p49
    %p51 = scmp.ne.s32.totalorder %s37, %s38
    %p52 = scmp.eq.s32.totalorder %s16, 1
    %p53 = por %p51, %p52
    %p55 = scmp.ne.s32.totalorder %s38, %s54
    %p56 = scmp.eq.s32.totalorder %s16, 0
    %p57 = por %p55, %p56
    %s59 = sadd.s32 %s58, 1
    %p62 = scmp.eq.s32.totalorder %s10, 1
    %p63 = scmp.ne.s32.totalorder %s58, %s60
    %p64 = scmp.eq.s32.totalorder %s10, 0
    %p65 = por %p63, %p64
    %p66 = scmp.ne.s32.totalorder %s58, %s60
    %p67 = scmp.eq.s32.totalorder %s15, 1
    %p68 = por %p66, %p67
    %p69 = scmp.ne.s32.totalorder %s60, %s61
    %p70 = scmp.eq.s32.totalorder %s15, 0
    %p71 = por %p69, %p70
    %p72 = scmp.ne.s32.totalorder %s60, %s61
    %p73 = scmp.eq.s32.totalorder %s16, 1
    %p74 = por %p72, %p73
    %p76 = scmp.ne.s32.totalorder %s61, %s75
    %p77 = scmp.eq.s32.totalorder %s16, 0
    %p78 = por %p76, %p77
    %s80 = sadd.s32 %s79, 1
    %p83 = scmp.eq.s32.totalorder %s10, 1
    %p84 = scmp.ne.s32.totalorder %s79, %s81
    %p85 = scmp.eq.s32.totalorder %s10, 0
    %p86 = por %p84, %p85
    %p87 = scmp.ne.s32.totalorder %s79, %s81
    %p88 = scmp.eq.s32.totalorder %s15, 1
    %p89 = por %p87, %p88
    %p90 = scmp.ne.s32.totalorder %s81, %s82
    %p91 = scmp.eq.s32.totalorder %s15, 0
    %p92 = por %p90, %p91
    %p93 = scmp.ne.s32.totalorder %s81, %s82
    %p94 = scmp.eq.s32.totalorder %s16, 1
    %p95 = por %p93, %p94
    %p97 = scmp.ne.s32.totalorder %s82, %s96
    %p98 = scmp.eq.s32.totalorder %s16, 0
    %p99 = por %p97, %p98
    %s101 = sadd.s32 %s100, 1
    %p104 = scmp.eq.s32.totalorder %s10, 1
    %p105 = scmp.ne.s32.totalorder %s100, %s102
    %p106 = scmp.eq.s32.totalorder %s10, 0
    %p107 = por %p105, %p106
    %p108 = scmp.ne.s32.totalorder %s100, %s102
    %p109 = scmp.eq.s32.totalorder %s15, 1
    %p110 = por %p108, %p109
    %p111 = scmp.ne.s32.totalorder %s102, %s103
    %p112 = scmp.eq.s32.totalorder %s15, 0
    %p113 = por %p111, %p112
    %p114 = scmp.ne.s32.totalorder %s102, %s103
    %p115 = scmp.eq.s32.totalorder %s16, 1
    %p116 = por %p114, %p115
    %p118 = scmp.ne.s32.totalorder %s103, %s117
    %p119 = scmp.eq.s32.totalorder %s16, 0
    %p120 = por %p118, %p119
    %s121 = ssub.s32 %s17, %s29
    %s122 = ssub.s32 %s18, %s25
    %s123 = sor.u32 %s121, %s122
    %p124 = scmp.eq.s32.totalorder %s123, 0
    %s126 = sadd.s32 %s125, 1
    %s127 = scalar_select %p124, %s125, %s126
    %p130 = pneg %p124
    %p131 = scmp.eq.s32.totalorder %s10, 1
    %p132 = por %p130, %p131
    %p133 = scmp.ne.s32.totalorder %s125, %s128
    %p134 = scmp.eq.s32.totalorder %s10, 0
    %p135 = por %p133, %p134
    %p136 = scmp.ne.s32.totalorder %s125, %s128
    %p137 = scmp.eq.s32.totalorder %s15, 1
    %p138 = por %p136, %p137
    %p139 = scmp.ne.s32.totalorder %s128, %s129
    %p140 = scmp.eq.s32.totalorder %s15, 0
    %p141 = por %p139, %p140
    %p142 = scmp.ne.s32.totalorder %s128, %s129
    %p143 = scmp.eq.s32.totalorder %s16, 1
    %p144 = por %p142, %p143
    %p146 = scmp.ne.s32.totalorder %s129, %s145
    %p147 = scmp.eq.s32.totalorder %s16, 0
    %p148 = por %p146, %p147
    %p149 = scmp.le.s32.totalorder 1, %s10
    %p150 = scmp.lt.s32.totalorder %s10, 3
    %p151 = pnand %p149, %p150
    %p152 = pneg %p151
    // Predicated region
    $region9: #{deconvblock_forward.3} parent=5 // pred_check
      _
    $region10: #{deconvblock_forward.3} parent=5 // pred_check_branch
      %154 = sbr.rel (%p151) target = $region12
    $region11: #{deconvblock_forward.3} parent=5 // pred_region
      %s155 = ssub.s32 %s10, 1
      // Predicated region
      $region13: #{deconvblock_forward.3} parent=11 // pred_check
        %p156 = pneg %p71
      $region14: #{deconvblock_forward.3} parent=11 // pred_check_branch
        %158 = sbr.rel (%p156) target = $region16
      $region15: #{deconvblock_forward.3} parent=11 // pred_region
        _
      $region16: #{deconvblock_forward.3} parent=11 // pred_fallthru
        _
      // Predicated region
      $region17: #{deconvblock_forward.3} parent=11 // pred_check
        %p159 = pneg %p92
      $region18: #{deconvblock_forward.3} parent=11 // pred_check_branch
        %161 = sbr.rel (%p159) target = $region20
      $region19: #{deconvblock_forward.3} parent=11 // pred_region
        _
      $region20: #{deconvblock_forward.3} parent=11 // pred_fallthru
        _
      // Predicated region
      $region21: #{deconvblock_forward.3} parent=11 // pred_check
        %p162 = pneg %p113
      $region22: #{deconvblock_forward.3} parent=11 // pred_check_branch
        %164 = sbr.rel (%p162) target = $region24
      $region23: #{deconvblock_forward.3} parent=11 // pred_region
        _
      $region24: #{deconvblock_forward.3} parent=11 // pred_fallthru
        _
    $region12: #{deconvblock_forward.3} parent=5 // pred_fallthru
      _
    %p165 = scmp.lt.s32.totalorder %s10, 2
    // Predicated region
    $region25: #{deconvblock_forward.3} parent=5 // pred_check
      %p166 = pneg %p165
    $region26: #{deconvblock_forward.3} parent=5 // pred_check_branch
      %168 = sbr.rel (%p166) target = $region28
    $region27: #{deconvblock_forward.3} parent=5 // pred_region
      // Predicated region
      $region29: #{deconvblock_forward.3} parent=27 // pred_check
        %p169 = pneg %p44
      $region30: #{deconvblock_forward.3} parent=27 // pred_check_branch
        %171 = sbr.rel (%p169) target = $region32
      $region31: #{deconvblock_forward.3} parent=27 // pred_region
        %s172 = smul.u32 2, %s18
        %p173 = scmp.lt.s32.totalorder %s17, 1
        %s174 = scalar_select %p173, %s17, 1
        %p175 = scmp.lt.s32.totalorder %s172, 1
        %s176 = scalar_select %p175, %s172, 1
        %s177 = smul.addr %s174, 2
        %s178 = sadd.s32 %s176, %s177
        %s179 = smul.addr %s178, 4
        %s180 = scalar_lea.vmem %s0, %s179
        %s181 = smul.u32 2, %s18
      $region32: #{deconvblock_forward.3} parent=27 // pred_fallthru
        _
    $region28: #{deconvblock_forward.3} parent=5 // pred_fallthru
      _
    %p182 = scmp.le.s32.totalorder 1, %s10
    %p183 = scmp.lt.s32.totalorder %s10, 3
    %p184 = pnand %p182, %p183
    %p185 = pneg %p184
    // Predicated region
    $region33: #{deconvblock_forward.3} parent=5 // pred_check
      _
    $region34: #{deconvblock_forward.3} parent=5 // pred_check_branch
      %187 = sbr.rel (%p184) target = $region36
    $region35: #{deconvblock_forward.3} parent=5 // pred_region
      %s188 = ssub.s32 %s10, 1
      %s189 = smul.u32 2, %s20
      %p190 = scmp.lt.s32.totalorder %s19, 1
      %s191 = scalar_select %p190, %s19, 1
      %p192 = scmp.lt.s32.totalorder %s189, 1
      %s193 = scalar_select %p192, %s189, 1
      %s194 = smul.addr %s191, 2
      %s195 = sadd.s32 %s193, %s194
      %s196 = smul.addr %s195, 4
      %s197 = scalar_lea.vmem %s0, %s196
      %p198 = pneg %p50
      %p199 = pneg %p47
      %p200 = pneg %p71
      %p201 = pneg %p68
      %p202 = pneg %p92
      %p203 = pneg %p89
      %p204 = pneg %p113
      %p205 = pneg %p110
      %p206 = pneg %p141
      %p207 = pneg %p138
      %s208 = smul.u32 2, %s20
      %p209 = scmp.lt.s32.totalorder %s19, 1
      %s210 = scalar_select %p209, %s19, 1
      %p211 = scmp.lt.s32.totalorder %s208, 1
      %s212 = scalar_select %p211, %s208, 1
      %s213 = smul.addr %s210, 8
      %s214 = sadd.s32 %s212, %s213
      %s215 = smul.addr %s214, 8
      %s216 = scalar_lea.vmem %s4, %s215
      %s217 = smul.u32 2, %s20
      %p218 = scmp.lt.s32.totalorder %s19, 1
      %s219 = scalar_select %p218, %s19, 1
      %p220 = scmp.lt.s32.totalorder %s217, 1
      %s221 = scalar_select %p220, %s217, 1
      %s222 = smul.addr %s219, 2
      %s223 = sadd.s32 %s221, %s222
      %s224 = smul.addr %s223, 4
      %s225 = scalar_lea.vmem %s0, %s224
      %s226 = smul.u32 2, %s20
      %s227 = smul.u32 2, %s20
      %p228 = scmp.lt.s32.totalorder %s19, 1
      %s229 = scalar_select %p228, %s19, 1
      %p230 = scmp.lt.s32.totalorder %s227, 1
      %s231 = scalar_select %p230, %s227, 1
      %s232 = smul.addr %s229, 8
      %s233 = sadd.s32 %s231, %s232
      %s234 = smul.addr %s233, 8
      %s235 = scalar_lea.vmem %s4, %s234
      %s236 = smul.u32 2, %s20
      %v237 = vld [vmem:[%s1] sm:$0xff]
      %v238 = vld [vmem:[%s1 + $0x8] sm:$0xff]
      %v239 = vld [vmem:[%s1 + $0x10] sm:$0xff]
      %v240 = vld [vmem:[%s1 + $0x18] sm:$0xff]
      %v241 = vld [vmem:[%s225] sm:$0xff]
      %v243 = vcombine.high %v241, %v241
      %vm244 = vcmask 31744
      %v246 = vsel %vm244, %v237, 0
      %v249 = vsel %vm244, %v238, 0
      %v252 = vsel %vm244, %v239, 0
      %v255 = vsel %vm244, %v240, 0
      %vm257 = vcmask 1043456
      %v258 = vsel %vm257, %v241, 0
      %v260 = vsel %vm257, %v243, 0
      %262 = vmatprep.subr.mxu0 0.0
      %263 = vmatpush1.msra.mxu0 0.0
      %264 = vmatprep.subr.mxu0 0.0
      %265 = vmatpush1.msra.mxu0 0.0
      %266 = vmatprep.subr.mxu0 0.0
      %267 = vmatpush1.msra.mxu0 0.0
      %268 = vmatprep.subr.mxu0 0.0
      %269 = vmatpush1.msra.mxu0 0.0
      %270 = vmatprep.subr.mxu0 0.0
      %271 = vmatpush1.msra.mxu0 0.0
      %272 = vmatprep.subr.mxu0 0.0
      %273 = vmatpush1.msra.mxu0 0.0
      %274 = vmatprep.subr.mxu0 0.0
      %275 = vmatpush1.msra.mxu0 0.0
      %276 = vmatprep.subr.mxu0 0.0
      %277 = vmatpush1.msra.mxu0 0.0
      %278 = vmatprep.subr.mxu0 0.0
      %279 = vmatpush1.msra.mxu0 0.0
      %280 = vmatprep.subr.mxu0 0.0
      %281 = vmatpush1.msra.mxu0 0.0
      %282 = vmatprep.subr.mxu0 0.0
      %283 = vmatpush1.msra.mxu0 0.0
      %284 = vmatprep.subr.mxu0 0.0
      %285 = vmatpush1.msra.mxu0 0.0
      %286 = vmatprep.subr.mxu0 0.0
      %287 = vmatpush1.msra.mxu0 0.0
      %288 = vmatprep.subr.mxu0 0.0
      %289 = vmatpush1.msra.mxu0 0.0
      %290 = vmatprep.subr.mxu0 0.0
      %291 = vmatpush1.msra.mxu0 0.0
      %292 = vmatprep.subr.mxu0 %v260
      %293 = vmatpush1.msra.mxu0 %v258
      %294 = vmatprep.subr.mxu0 0.0
      %295 = vmatpush2.msra.mxu0 0.0
      %296 = vmatprep.subr.mxu0 0.0
      %297 = vmatpush2.msra.mxu0 0.0
      %298 = vmatprep.subr.mxu0 0.0
      %299 = vmatpush2.msra.mxu0 0.0
      %300 = vmatprep.subr.mxu0 0.0
      %301 = vmatpush2.msra.mxu0 0.0
      %302 = vmatprep.subr.mxu0 0.0
      %303 = vmatpush2.msra.mxu0 0.0
      %304 = vmatprep.subr.mxu0 0.0
      %305 = vmatpush2.msra.mxu0 0.0
      %306 = vmatprep.subr.mxu0 0.0
      %307 = vmatpush2.msra.mxu0 0.0
      %308 = vmatprep.subr.mxu0 0.0
      %309 = vmatpush2.msra.mxu0 0.0
      %310 = vmatprep.subr.mxu0 0.0
      %311 = vmatpush2.msra.mxu0 0.0
      %312 = vmatprep.subr.mxu0 0.0
      %313 = vmatpush2.msra.mxu0 0.0
      %314 = vmatprep.subr.mxu0 0.0
      %315 = vmatpush2.msra.mxu0 0.0
      %316 = vmatprep.subr.mxu0 0.0
      %317 = vmatpush2.msra.mxu0 0.0
      %318 = vmatprep.subr.mxu0 0.0
      %319 = vmatpush2.msra.mxu0 0.0
      %320 = vmatprep.subr.mxu0 0.0
      %321 = vmatpush2.msra.mxu0 0.0
      %322 = vmatprep.subr.mxu0 0.0
      %323 = vmatpush2.msra.mxu0 0.0
      %324 = vmatprep.subr.mxu0 0.0
      %325 = vmatpush2.msra.mxu0 0.0
      %326 = vmatprep.mubr.f32.mxu0 0.0
      %327 = vmatmul.mubr.f32.gmra.mxu0 %v246
      %v328 = vpop.f32.mrf.mxu0
      %v329 = vadd.f32 0.0, %v328
      %v330 = vpop.f32.mrf.mxu0
      %v331 = vadd.f32 0.0, %v330
      %332 = vmatprep.mubr.f32.mxu0 0.0
      %333 = vmatmul.mubr.f32.gmra.mxu0 %v249
      %v334 = vpop.f32.mrf.mxu0
      %v335 = vadd.f32 0.0, %v334
      %v336 = vpop.f32.mrf.mxu0
      %v337 = vadd.f32 0.0, %v336
      %338 = vmatprep.mubr.f32.mxu0 0.0
      %339 = vmatmul.mubr.f32.gmra.mxu0 %v252
      %v340 = vpop.f32.mrf.mxu0
      %v341 = vadd.f32 0.0, %v340
      %v342 = vpop.f32.mrf.mxu0
      %v343 = vadd.f32 0.0, %v342
      %344 = vmatprep.mubr.f32.mxu0 0.0
      %345 = vmatmul.mubr.f32.gmra.mxu0 %v255
      %v346 = vpop.f32.mrf.mxu0
      %v347 = vadd.f32 0.0, %v346
      %v348 = vpop.f32.mrf.mxu0
      %v349 = vadd.f32 0.0, %v348
      %350 = vdwg.mxu0
      %v351 = vld [vmem:[%s2] sm:$0xff]
      %v352 = vld [vmem:[%s2 + $0x8] sm:$0xff]
      %v353 = vld [vmem:[%s2 + $0x10] sm:$0xff]
      %v354 = vld [vmem:[%s2 + $0x18] sm:$0xff]
      %356 = vset.pattern.permute.xlu0 0
      %357 = vperm.xlu0 %356, %v351
      %v358 = vpop.permute.xlu0 %357
      %361 = vset.pattern.permute.xlu0 0
      %362 = vperm.xlu0 %361, %v352
      %v363 = vpop.permute.xlu0 %362
      %366 = vset.pattern.permute.xlu0 0
      %367 = vperm.xlu0 %366, %v353
      %v368 = vpop.permute.xlu0 %367
      %371 = vset.pattern.permute.xlu0 0
      %372 = vperm.xlu0 %371, %v354
      %v373 = vpop.permute.xlu0 %372
      %v375 = vmul.f32 %v329, %v358
      %v376 = vmul.f32 %v331, %v358
      %v377 = vmul.f32 %v335, %v363
      %v378 = vmul.f32 %v337, %v363
      %v379 = vmul.f32 %v341, %v368
      %v380 = vmul.f32 %v343, %v368
      %v381 = vmul.f32 %v347, %v373
      %v382 = vmul.f32 %v349, %v373
      %v383 = vld [vmem:[%s3] sm:$0xff]
      %v384 = vld [vmem:[%s3 + $0x8] sm:$0xff]
      %v385 = vld [vmem:[%s3 + $0x10] sm:$0xff]
      %v386 = vld [vmem:[%s3 + $0x18] sm:$0xff]
      %388 = vset.pattern.permute.xlu0 0
      %389 = vperm.xlu0 %388, %v383
      %v390 = vpop.permute.xlu0 %389
      %393 = vset.pattern.permute.xlu0 0
      %394 = vperm.xlu0 %393, %v384
      %v395 = vpop.permute.xlu0 %394
      %398 = vset.pattern.permute.xlu0 0
      %399 = vperm.xlu0 %398, %v385
      %v400 = vpop.permute.xlu0 %399
      %403 = vset.pattern.permute.xlu0 0
      %404 = vperm.xlu0 %403, %v386
      %v405 = vpop.permute.xlu0 %404
      %v407 = vadd.f32 %v375, %v390
      %v408 = vadd.f32 %v376, %v390
      %v409 = vadd.f32 %v377, %v395
      %v410 = vadd.f32 %v378, %v395
      %v411 = vadd.f32 %v379, %v400
      %v412 = vadd.f32 %v380, %v400
      %v413 = vadd.f32 %v381, %v405
      %v414 = vadd.f32 %v382, %v405
      %v415 = vmax.f32 %v407, 0.0
      %v416 = vmax.f32 %v408, 0.0
      %v417 = vmax.f32 %v409, 0.0
      %v418 = vmax.f32 %v410, 0.0
      %v419 = vmax.f32 %v411, 0.0
      %v420 = vmax.f32 %v412, 0.0
      %v421 = vmax.f32 %v413, 0.0
      %v422 = vmax.f32 %v414, 0.0
      %423 = vst [vmem:[%s235] sm:$0xff] %v415
      %424 = vst [vmem:[%s235 + $0x8] sm:$0xff] %v416
      %425 = vst [vmem:[%s235 + $0x10] sm:$0xff] %v417
      %426 = vst [vmem:[%s235 + $0x18] sm:$0xff] %v418
      %427 = vst [vmem:[%s235 + $0x20] sm:$0xff] %v419
      %428 = vst [vmem:[%s235 + $0x28] sm:$0xff] %v420
      %429 = vst [vmem:[%s235 + $0x30] sm:$0xff] %v421
      %430 = vst [vmem:[%s235 + $0x38] sm:$0xff] %v422
      %s431 = smul.u32 2, %s20
      %p432 = scmp.lt.s32.totalorder %s19, 1
      %s433 = scalar_select %p432, %s19, 1
      %p434 = scmp.lt.s32.totalorder %s431, 1
      %s435 = scalar_select %p434, %s431, 1
      %s436 = smul.addr %s433, 8
      %s437 = sadd.s32 %s435, %s436
      %s438 = smul.addr %s437, 8
      %s439 = scalar_lea.vmem %s4, %s438
      // Predicated region
      $region37: #{deconvblock_forward.3} parent=35 // pred_check
        %p440 = pneg %p138
      $region38: #{deconvblock_forward.3} parent=35 // pred_check_branch
        %442 = sbr.rel (%p440) target = $region40
      $region39: #{deconvblock_forward.3} parent=35 // pred_region
        %s443 = smul.u32 2, %s20
      $region40: #{deconvblock_forward.3} parent=35 // pred_fallthru
        _
    $region36: #{deconvblock_forward.3} parent=5 // pred_fallthru
      _
    %p444 = scmp.le.s32.totalorder 2, %s10
    // Predicated region
    $region41: #{deconvblock_forward.3} parent=5 // pred_check
      %p445 = pneg %p444
    $region42: #{deconvblock_forward.3} parent=5 // pred_check_branch
      %447 = sbr.rel (%p445) target = $region44
    $region43: #{deconvblock_forward.3} parent=5 // pred_region
      %s448 = ssub.s32 %s10, 2
      // Predicated region
      $region45: #{deconvblock_forward.3} parent=43 // pred_check
        %p449 = pneg %p144
      $region46: #{deconvblock_forward.3} parent=43 // pred_check_branch
        %451 = sbr.rel (%p449) target = $region48
      $region47: #{deconvblock_forward.3} parent=43 // pred_region
        %s452 = smul.u32 2, %s22
        %p453 = scmp.lt.s32.totalorder %s21, 1
        %s454 = scalar_select %p453, %s21, 1
        %p455 = scmp.lt.s32.totalorder %s452, 1
        %s456 = scalar_select %p455, %s452, 1
        %s457 = smul.addr %s454, 8
        %s458 = sadd.s32 %s456, %s457
        %s459 = smul.addr %s458, 8
        %s460 = scalar_lea.vmem %s4, %s459
      $region48: #{deconvblock_forward.3} parent=43 // pred_fallthru
        _
    $region44: #{deconvblock_forward.3} parent=5 // pred_fallthru
      _
  $region6: #{deconvblock_forward.3} parent=0 // loop_footer
    %s14 = sadd.s32 1, %s10
  $region7: #{deconvblock_forward.3} parent=0 // loop_footer_branch
    %9 = sbr.rel target = $region3
  $region8: #{deconvblock_forward.3} parent=0 // loop_exit
    _

</llo_original>
